<compile_context>
chip_gen: v5e
topology: v5e:2x2
jax: 0.10.0
libtpu: 0.0.40
codegen_flags: <defaults>
</compile_context>

<pallas_src>
import jax
import jax.numpy as jnp
import numpy as np
from jax import lax
from jax.experimental import pallas as pl
from jax.experimental.pallas import tpu as pltpu

BS = 2
C_IN = 4
C_PAD = 8                             # channels zero-padded to a full sublane tile
W_IN = 600
KS = 9                                # conv kernel width
K = 8                                 # conv out-channels
W_CONV = W_IN - KS + 1                # 592
POOL = 4
W_POOL = (W_CONV - POOL) // POOL + 1  # 148 (592 % 4 == 0 -> ceil_mode irrelevant here)
HID = 32
FEAT = K * W_POOL                     # 1184
NCLS = 2


def controller_kernel(x_ref, convw_ref, convb_ref, w4_ref, msk_ref, fold_ref,
                      beff_ref, cw_ref, cb_ref, out_ref):
    xs = x_ref[0]                                             # (C_PAD, W_IN)

    # --- Conv2d(4->8, (1,9)) + bias + ReLU as ONE im2col matmul (contraction 72) ---
    cols = jnp.concatenate([xs[:, j:j + W_CONV] for j in range(KS)],
                           axis=0)                            # (KS*C_PAD, W_CONV) = (72, 592)
    acc = jnp.dot(convw_ref[...], cols,
                  preferred_element_type=jnp.float32)         # (K, W_CONV)
    acc = jnp.maximum(acc + convb_ref[...], 0.0)

    # --- avgpool + mypool + flatten + dense Linear, folded into one weight W4 ---
    # P[k, k2*HID + j] = sum_v acc[k, v] * W3[k2, v, j]; only the diagonal blocks
    # (k2 == k) are needed, selected with a 0/1 mask, summed over rows and folded
    # back to HID lanes with a tiny 0/1 matmul (avoids an in-kernel flatten/reshape).
    P = jnp.dot(acc, w4_ref[...],
                preferred_element_type=jnp.float32)           # (K, K*HID) = (8, 256)
    colsum = jnp.sum(P * msk_ref[...], axis=0, keepdims=True) # (1, K*HID)
    h = jnp.dot(colsum, fold_ref[...],
                preferred_element_type=jnp.float32) + beff_ref[...]      # (1, HID)
    h = jnp.maximum(h, 0.0)
    # TODO(synk): Dropout(0.5) implemented as inference-mode identity; training-mode masking omitted.

    # --- classifier Linear(32->2) + log_softmax(dim=1) ---
    logits = jnp.dot(h, cw_ref[...],
                     preferred_element_type=jnp.float32) + cb_ref[...]   # (1, NCLS)
    m = jnp.max(logits, axis=-1, keepdims=True)
    z = logits - m
    logp = z - jnp.log(jnp.sum(jnp.exp(z), axis=-1, keepdims=True))
    out_ref[...] = logp.reshape(1, 1, NCLS)


def controller_forward(x_nchw, params):
    conv_w, conv_b, p_w, p_b, d_w, d_b, c_w, c_b = params

    # ---------- one-time pure-JAX parameter folding (outside the kernel) ----------
    # Conv weight -> im2col layout (K, KS*C_PAD); padded input channels get zero weights.
    w2 = conv_w[:, :, 0, :]                                   # (K, C_IN, KS)
    w2p = jnp.pad(w2, ((0, 0), (0, C_PAD - C_IN), (0, 0)))    # (K, C_PAD, KS)
    convw_flat = jnp.transpose(w2p, (0, 2, 1)).reshape(K, KS * C_PAD)   # (K, 72)
    convb_k = conv_b.reshape(K, 1)

    # Fold avgpool((1,4)/(1,4)) + mypool channel mix + flatten + dense(1184->32):
    #   hid = ReLU(b_eff + sum_{k,v} relu_conv[k,v] * W3[k,v,:])
    #   W3[k,v,j] = (1/4) * sum_{k2} p_w[k,k2] * d_w[j, k2*W_POOL + v//4]
    #   b_eff[j]  = d_b[j] + sum_{k2,p} d_w[j, k2*W_POOL + p] * p_b[k2]
    D = d_w.reshape(HID, K, W_POOL)                           # D[j, k2, p]
    Dp = jnp.repeat(D, POOL, axis=2) / POOL                   # (HID, K, W_CONV)
    W3 = jnp.einsum('ab,jbv->avj', p_w, Dp)                   # (K, W_CONV, HID)
    w4 = jnp.transpose(W3, (1, 0, 2)).reshape(W_CONV, K * HID)          # (592, 256)
    beff = (d_b + jnp.einsum('jbp,b->j', D, p_b)).reshape(1, HID)

    # Diagonal-block selection constants (see kernel comment).
    msk = (jnp.arange(K * HID)[None, :] // HID ==
           jnp.arange(K)[:, None]).astype(jnp.float32)        # (K, K*HID)
    fold = (jnp.arange(K * HID)[:, None] % HID ==
            jnp.arange(HID)[None, :]).astype(jnp.float32)     # (K*HID, HID)

    cw_k = c_w.T                                              # (HID, NCLS)
    cb_k = c_b.reshape(1, NCLS)

    x_k = x_nchw[:, :, 0, :]                                  # (N, C_IN, W_IN)
    x_pad = jnp.pad(x_k, ((0, 0), (0, C_PAD - C_IN), (0, 0))) # (N, C_PAD, W_IN)

    def full(a):
        nd = a.ndim
        return pl.BlockSpec(a.shape, lambda n, _nd=nd: (0,) * _nd)

    out = pl.pallas_call(
        controller_kernel,
        out_shape=jax.ShapeDtypeStruct((BS, 1, NCLS), jnp.float32),
        grid_spec=pltpu.PrefetchScalarGridSpec(
            num_scalar_prefetch=0,
            grid=(BS,),
            in_specs=[
                pl.BlockSpec((1, C_PAD, W_IN), lambda n: (n, 0, 0)),
                full(convw_flat), full(convb_k), full(w4),
                full(msk), full(fold), full(beff),
                full(cw_k), full(cb_k),
            ],
            out_specs=pl.BlockSpec((1, 1, NCLS), lambda n: (n, 0, 0)),
        ),
        compiler_params=pltpu.CompilerParams(dimension_semantics=("parallel",)),
    )(x_pad, convw_flat, convb_k, w4, msk, fold, beff, cw_k, cb_k)
    return out.reshape(BS, NCLS)


def reference_forward(x_nchw, params):
    """Pure-JAX mirror of the PyTorch forward (eval mode) for verification."""
    conv_w, conv_b, p_w, p_b, d_w, d_b, c_w, c_b = params
    y = lax.conv_general_dilated(x_nchw, conv_w, window_strides=(1, 1),
                                 padding='VALID',
                                 dimension_numbers=('NCHW', 'OIHW', 'NCHW'))
    y = jnp.maximum(y + conv_b.reshape(1, -1, 1, 1), 0.0)
    n, k, h, w = y.shape
    y = y.reshape(n, k, h, w // POOL, POOL).mean(-1)          # AvgPool2d (1,4)/(1,4)
    yt = jnp.transpose(y, (0, 2, 3, 1))                       # mypool: NCHW -> NHWC
    yt = jnp.matmul(yt, p_w) + p_b
    y = jnp.transpose(yt, (0, 3, 1, 2))
    flat = y.reshape(n, -1)
    hdn = jnp.maximum(flat @ d_w.T + d_b, 0.0)                # dense + ReLU (+ Dropout eval = id)
    logits = hdn @ c_w.T + c_b                                # classifier
    return jax.nn.log_softmax(logits, axis=1)


if __name__ == "__main__":
    key = jax.random.PRNGKey(0)
    keys = jax.random.split(key, 9)
    u = lambda k_, shape: jax.random.uniform(k_, shape, jnp.float32, -0.1, 0.1)

    # Deterministic synthetic parameters (shapes per the module's __init__).
    conv_w = u(keys[0], (K, C_IN, 1, KS))      # Conv2d weight (out, in, 1, 9)
    conv_b = u(keys[1], (K,))
    p_w = u(keys[2], (K, K))                   # mypool weight
    p_b = u(keys[3], (K,))
    d_w = u(keys[4], (HID, FEAT))              # Linear(1184, 32) weight
    d_b = u(keys[5], (HID,))
    c_w = u(keys[6], (NCLS, HID))              # Linear(32, 2) weight
    c_b = u(keys[7], (NCLS,))
    params = (conv_w, conv_b, p_w, p_b, d_w, d_b, c_w, c_b)

    # Input: NCHW = (batch, 4, 1, 600) per the module's channel/signal_width.
    x = jax.random.normal(keys[8], (BS, C_IN, 1, W_IN), jnp.float32)

    out = jax.block_until_ready(controller_forward(x, params))
    ref = jax.block_until_ready(reference_forward(x, params))

    assert out.shape == (BS, NCLS), out.shape
    np.testing.assert_allclose(np.asarray(out), np.asarray(ref), rtol=1e-4, atol=1e-4)
    print("KERNEL_OK")
</pallas_src>

<mosaic_0001>
module attributes {stable_mosaic.version = 11 : i64} {
  func.func @controller_kernel(%arg0: i32, %arg1: memref<1x8x600xf32, #tpu.memory_space<vmem>>, %arg2: memref<8x72xf32, #tpu.memory_space<vmem>>, %arg3: memref<8x1xf32, #tpu.memory_space<vmem>>, %arg4: memref<592x256xf32, #tpu.memory_space<vmem>>, %arg5: memref<8x256xf32, #tpu.memory_space<vmem>>, %arg6: memref<256x32xf32, #tpu.memory_space<vmem>>, %arg7: memref<1x32xf32, #tpu.memory_space<vmem>>, %arg8: memref<32x2xf32, #tpu.memory_space<vmem>>, %arg9: memref<1x2xf32, #tpu.memory_space<vmem>>, %arg10: memref<1x1x2xf32, #tpu.memory_space<vmem>>) attributes {dimension_semantics = [#tpu.dimension_semantics<parallel>], iteration_bounds = array<i64: 2>, scalar_prefetch = 0 : i64, scratch_operands = 0 : i64, tpu.core_type = #tpu.core_type<tc>, window_params = [{transform_indices = @transform_0, window_bounds = array<i64: 1, 8, 600>}, {pipeline_mode = #tpu.pipeline_mode<synchronous>, transform_indices = @transform_1, window_bounds = array<i64: 8, 72>}, {pipeline_mode = #tpu.pipeline_mode<synchronous>, transform_indices = @transform_2, window_bounds = array<i64: 8, 1>}, {pipeline_mode = #tpu.pipeline_mode<synchronous>, transform_indices = @transform_3, window_bounds = array<i64: 592, 256>}, {pipeline_mode = #tpu.pipeline_mode<synchronous>, transform_indices = @transform_4, window_bounds = array<i64: 8, 256>}, {pipeline_mode = #tpu.pipeline_mode<synchronous>, transform_indices = @transform_5, window_bounds = array<i64: 256, 32>}, {pipeline_mode = #tpu.pipeline_mode<synchronous>, transform_indices = @transform_6, window_bounds = array<i64: 1, 32>}, {pipeline_mode = #tpu.pipeline_mode<synchronous>, transform_indices = @transform_7, window_bounds = array<i64: 32, 2>}, {pipeline_mode = #tpu.pipeline_mode<synchronous>, transform_indices = @transform_8, window_bounds = array<i64: 1, 2>}, {transform_indices = @transform_9, window_bounds = array<i64: 1, 1, 2>}]} {
    %c0 = arith.constant 0 : index
    %c0_0 = arith.constant 0 : index
    %c0_1 = arith.constant 0 : index
    %0 = vector.load %arg1[%c0, %c0_0, %c0_1] : memref<1x8x600xf32, #tpu.memory_space<vmem>>, vector<1x8x600xf32>
    %1 = vector.shape_cast %0 : vector<1x8x600xf32> to vector<8x600xf32>
    %2 = vector.extract_strided_slice %1 {offsets = [0, 0], sizes = [8, 592], strides = [1, 1]} : vector<8x600xf32> to vector<8x592xf32>
    %3 = vector.extract_strided_slice %1 {offsets = [0, 1], sizes = [8, 592], strides = [1, 1]} : vector<8x600xf32> to vector<8x592xf32>
    %4 = vector.extract_strided_slice %1 {offsets = [0, 2], sizes = [8, 592], strides = [1, 1]} : vector<8x600xf32> to vector<8x592xf32>
    %5 = vector.extract_strided_slice %1 {offsets = [0, 3], sizes = [8, 592], strides = [1, 1]} : vector<8x600xf32> to vector<8x592xf32>
    %6 = vector.extract_strided_slice %1 {offsets = [0, 4], sizes = [8, 592], strides = [1, 1]} : vector<8x600xf32> to vector<8x592xf32>
    %7 = vector.extract_strided_slice %1 {offsets = [0, 5], sizes = [8, 592], strides = [1, 1]} : vector<8x600xf32> to vector<8x592xf32>
    %8 = vector.extract_strided_slice %1 {offsets = [0, 6], sizes = [8, 592], strides = [1, 1]} : vector<8x600xf32> to vector<8x592xf32>
    %9 = vector.extract_strided_slice %1 {offsets = [0, 7], sizes = [8, 592], strides = [1, 1]} : vector<8x600xf32> to vector<8x592xf32>
    %10 = vector.extract_strided_slice %1 {offsets = [0, 8], sizes = [8, 592], strides = [1, 1]} : vector<8x600xf32> to vector<8x592xf32>
    %11 = tpu.concatenate %2, %3, %4, %5, %6, %7, %8, %9, %10 in 0 : vector<8x592xf32>, vector<8x592xf32>, vector<8x592xf32>, vector<8x592xf32>, vector<8x592xf32>, vector<8x592xf32>, vector<8x592xf32>, vector<8x592xf32>, vector<8x592xf32> -> vector<72x592xf32>
    %c0_2 = arith.constant 0 : index
    %c0_3 = arith.constant 0 : index
    %12 = vector.load %arg2[%c0_2, %c0_3] : memref<8x72xf32, #tpu.memory_space<vmem>>, vector<8x72xf32>
    %cst = arith.constant dense<0.000000e+00> : vector<8x592xf32>
    %13 = tpu.matmul %12, %11, %cst {dimension_numbers = #tpu.dot_dimension_numbers<[1], [0], [0], [1], [0, 0, 1, 1], [], []>} : vector<8x72xf32>, vector<72x592xf32>, vector<8x592xf32> -> vector<8x592xf32>
    %c0_4 = arith.constant 0 : index
    %c0_5 = arith.constant 0 : index
    %14 = vector.load %arg3[%c0_4, %c0_5] : memref<8x1xf32, #tpu.memory_space<vmem>>, vector<8x1xf32>
    %15 = vector.broadcast %14 : vector<8x1xf32> to vector<8x592xf32>
    %16 = arith.addf %13, %15 : vector<8x592xf32>
    %cst_6 = arith.constant 0.000000e+00 : f32
    %17 = vector.broadcast %cst_6 : f32 to vector<8x592xf32>
    %18 = arith.maximumf %16, %17 : vector<8x592xf32>
    %c0_7 = arith.constant 0 : index
    %c0_8 = arith.constant 0 : index
    %19 = vector.load %arg4[%c0_7, %c0_8] : memref<592x256xf32, #tpu.memory_space<vmem>>, vector<592x256xf32>
    %cst_9 = arith.constant dense<0.000000e+00> : vector<8x256xf32>
    %20 = tpu.matmul %18, %19, %cst_9 {dimension_numbers = #tpu.dot_dimension_numbers<[1], [0], [0], [1], [0, 0, 1, 1], [], []>} : vector<8x592xf32>, vector<592x256xf32>, vector<8x256xf32> -> vector<8x256xf32>
    %c0_10 = arith.constant 0 : index
    %c0_11 = arith.constant 0 : index
    %21 = vector.load %arg5[%c0_10, %c0_11] : memref<8x256xf32, #tpu.memory_space<vmem>>, vector<8x256xf32>
    %22 = arith.mulf %20, %21 : vector<8x256xf32>
    %cst_12 = arith.constant dense<0.000000e+00> : vector<256xf32>
    %23 = vector.multi_reduction <add>, %22, %cst_12 [0] : vector<8x256xf32> to vector<256xf32>
    %24 = vector.shape_cast %23 : vector<256xf32> to vector<1x256xf32>
    %c0_13 = arith.constant 0 : index
    %c0_14 = arith.constant 0 : index
    %25 = vector.load %arg6[%c0_13, %c0_14] : memref<256x32xf32, #tpu.memory_space<vmem>>, vector<256x32xf32>
    %cst_15 = arith.constant dense<0.000000e+00> : vector<1x32xf32>
    %26 = tpu.matmul %24, %25, %cst_15 {dimension_numbers = #tpu.dot_dimension_numbers<[1], [0], [0], [1], [0, 0, 1, 1], [], []>} : vector<1x256xf32>, vector<256x32xf32>, vector<1x32xf32> -> vector<1x32xf32>
    %c0_16 = arith.constant 0 : index
    %c0_17 = arith.constant 0 : index
    %27 = vector.load %arg7[%c0_16, %c0_17] : memref<1x32xf32, #tpu.memory_space<vmem>>, vector<1x32xf32>
    %28 = arith.addf %26, %27 : vector<1x32xf32>
    %cst_18 = arith.constant 0.000000e+00 : f32
    %29 = vector.broadcast %cst_18 : f32 to vector<1x32xf32>
    %30 = arith.maximumf %28, %29 : vector<1x32xf32>
    %c0_19 = arith.constant 0 : index
    %c0_20 = arith.constant 0 : index
    %31 = vector.load %arg8[%c0_19, %c0_20] : memref<32x2xf32, #tpu.memory_space<vmem>>, vector<32x2xf32>
    %cst_21 = arith.constant dense<0.000000e+00> : vector<1x2xf32>
    %32 = tpu.matmul %30, %31, %cst_21 {dimension_numbers = #tpu.dot_dimension_numbers<[1], [0], [0], [1], [0, 0, 1, 1], [], []>} : vector<1x32xf32>, vector<32x2xf32>, vector<1x2xf32> -> vector<1x2xf32>
    %c0_22 = arith.constant 0 : index
    %c0_23 = arith.constant 0 : index
    %33 = vector.load %arg9[%c0_22, %c0_23] : memref<1x2xf32, #tpu.memory_space<vmem>>, vector<1x2xf32>
    %34 = arith.addf %32, %33 : vector<1x2xf32>
    %cst_24 = arith.constant dense<0xFF800000> : vector<1xf32>
    %35 = vector.multi_reduction <maximumf>, %34, %cst_24 [1] : vector<1x2xf32> to vector<1xf32>
    %36 = vector.shape_cast %35 : vector<1xf32> to vector<1x1xf32>
    %37 = vector.broadcast %36 : vector<1x1xf32> to vector<1x2xf32>
    %38 = arith.subf %34, %37 : vector<1x2xf32>
    %39 = math.exp %38 : vector<1x2xf32>
    %cst_25 = arith.constant dense<0.000000e+00> : vector<1xf32>
    %40 = vector.multi_reduction <add>, %39, %cst_25 [1] : vector<1x2xf32> to vector<1xf32>
    %41 = vector.shape_cast %40 : vector<1xf32> to vector<1x1xf32>
    %42 = math.log %41 : vector<1x1xf32>
    %43 = vector.broadcast %42 : vector<1x1xf32> to vector<1x2xf32>
    %44 = arith.subf %38, %43 : vector<1x2xf32>
    %45 = vector.shape_cast %44 : vector<1x2xf32> to vector<1x1x2xf32>
    %c0_26 = arith.constant 0 : index
    %c0_27 = arith.constant 0 : index
    %c0_28 = arith.constant 0 : index
    %46 = vector.load %arg10[%c0_26, %c0_27, %c0_28] : memref<1x1x2xf32, #tpu.memory_space<vmem>>, vector<1x1x2xf32>
    tpu.vector_store %arg10[%c0_26, %c0_27, %c0_28], %45 {strides = array<i32>} : memref<1x1x2xf32, #tpu.memory_space<vmem>>, vector<1x1x2xf32>,
    return
  }
  func.func @transform_0(%arg0: i32) -> (i32, i32, i32) {
    %c0_i32 = arith.constant 0 : i32
    %c0_i32_0 = arith.constant 0 : i32
    %c0_i32_1 = arith.constant 0 : i32
    return %arg0, %c0_i32, %c0_i32_0 : i32, i32, i32
  }
  func.func @transform_1(%arg0: i32) -> (i32, i32) {
    %c0_i32 = arith.constant 0 : i32
    %c0_i32_0 = arith.constant 0 : i32
    %c0_i32_1 = arith.constant 0 : i32
    return %c0_i32, %c0_i32_0 : i32, i32
  }
  func.func @transform_2(%arg0: i32) -> (i32, i32) {
    %c0_i32 = arith.constant 0 : i32
    %c0_i32_0 = arith.constant 0 : i32
    %c0_i32_1 = arith.constant 0 : i32
    return %c0_i32, %c0_i32_0 : i32, i32
  }
  func.func @transform_3(%arg0: i32) -> (i32, i32) {
    %c0_i32 = arith.constant 0 : i32
    %c0_i32_0 = arith.constant 0 : i32
    %c0_i32_1 = arith.constant 0 : i32
    return %c0_i32, %c0_i32_0 : i32, i32
  }
  func.func @transform_4(%arg0: i32) -> (i32, i32) {
    %c0_i32 = arith.constant 0 : i32
    %c0_i32_0 = arith.constant 0 : i32
    %c0_i32_1 = arith.constant 0 : i32
    return %c0_i32, %c0_i32_0 : i32, i32
  }
  func.func @transform_5(%arg0: i32) -> (i32, i32) {
    %c0_i32 = arith.constant 0 : i32
    %c0_i32_0 = arith.constant 0 : i32
    %c0_i32_1 = arith.constant 0 : i32
    return %c0_i32, %c0_i32_0 : i32, i32
  }
  func.func @transform_6(%arg0: i32) -> (i32, i32) {
    %c0_i32 = arith.constant 0 : i32
    %c0_i32_0 = arith.constant 0 : i32
    %c0_i32_1 = arith.constant 0 : i32
    return %c0_i32, %c0_i32_0 : i32, i32
  }
  func.func @transform_7(%arg0: i32) -> (i32, i32) {
    %c0_i32 = arith.constant 0 : i32
    %c0_i32_0 = arith.constant 0 : i32
    %c0_i32_1 = arith.constant 0 : i32
    return %c0_i32, %c0_i32_0 : i32, i32
  }
  func.func @transform_8(%arg0: i32) -> (i32, i32) {
    %c0_i32 = arith.constant 0 : i32
    %c0_i32_0 = arith.constant 0 : i32
    %c0_i32_1 = arith.constant 0 : i32
    return %c0_i32, %c0_i32_0 : i32, i32
  }
  func.func @transform_9(%arg0: i32) -> (i32, i32, i32) {
    %c0_i32 = arith.constant 0 : i32
    %c0_i32_0 = arith.constant 0 : i32
    %c0_i32_1 = arith.constant 0 : i32
    return %arg0, %c0_i32, %c0_i32_0 : i32, i32, i32
  }
}

</mosaic_0001>

<llo_original>
// kernel: tpu_custom_call.1
$region0: #{tpu_custom_call.1}
  #allocation0 [shape = 'u32[]', space=smem, size = 0x4, offset = 0x4, fixed_abs, tag = 'smem constant byte address 0x4 - core index']
  #allocation1 [shape = 'u32[72,128]{1,0:T(1,128)}', space=vmem, size = 0x9000, scoped, tag = 'internal scratch']
  %s0 = inlined_call_operand.vmem [shape: f32[2,8,600], index: 0, kind: input, shape index: {}]
  %s1 = inlined_call_operand.vmem [shape: f32[8,72], index: 1, kind: input, shape index: {}]
  %s2 = inlined_call_operand.vmem [shape: f32[8,1], index: 2, kind: input, shape index: {}]
  %s3 = inlined_call_operand.hbm [shape: f32[592,256], index: 3, kind: input, shape index: {}]
  %s4 = inlined_call_operand.vmem [shape: f32[8,256], index: 4, kind: input, shape index: {}]
  %s5 = inlined_call_operand.vmem [shape: f32[256,32], index: 5, kind: input, shape index: {}]
  %s6 = inlined_call_operand.vmem [shape: f32[1,32], index: 6, kind: input, shape index: {}]
  %s7 = inlined_call_operand.vmem [shape: f32[32,2], index: 7, kind: input, shape index: {}]
  %s8 = inlined_call_operand.vmem [shape: f32[1,2], index: 8, kind: input, shape index: {}]
  %s9 = inlined_call_operand.hbm [shape: f32[2,1,2], index: 9, kind: output, shape index: {}]
  %s10 = sld [smem:[#allocation0]]
  $region73: #{tpu_custom_call.1} parent=0
    _
  %s12 = ssub.s32 1, %s10
  %s13 = scalar_select 0, %s12, %s10
  $region1: #{tpu_custom_call.1} parent=0
    #allocation2 [shape = 'u8[606208]{0}', space=vmem, size = 0x94000, scoped, tag = 'input window, operand 3, single buffered']
    #allocation3 [shape = 's32[2]{0}', space=sflag, size = 0x8, scoped, tag = 'scoped memory for tpu_custom_call.1']
    #allocation4 [shape = 's32[2]{0}', space=sflag, size = 0x8, scoped, tag = 'scoped memory for tpu_custom_call.1']
    #allocation5 [shape = 'u8[1024]{0}', space=vmem, size = 0x400, scoped, tag = 'output window, operand 0']
    %14 = vsyncpa [#allocation3], 0
    %15 = vsyncpa [#allocation4], 0
    %s16 = scalar_lea.sflag [#allocation4], 1
    %17 = vsyncpa %s16, 0
    loop: start=0, step=1, limit=4
    $region2: #{tpu_custom_call.1} parent=1 // loop_pre_header
      _
    $region3: #{tpu_custom_call.1} parent=1 // loop_header
      %s19 = sphi 0, %s23
      %p20 = scmp.ge.s32.totalorder %s19, 4
      %s29 = sphi 0, %s31
      %s32 = sphi 0, %s29
      %s33 = sphi 0, %s32
      %s49 = sphi 0, %s33
      %s53 = sphi 0, %s53
      %s55 = sphi 0, %s53
      %s56 = sphi 0, %s55
      %s70 = sphi 0, %s56
      %s74 = sphi 0, %s74
      %s76 = sphi 0, %s74
      %s77 = sphi 0, %s76
      %s91 = sphi 0, %s77
      %s95 = sphi 0, %s95
      %s97 = sphi 0, %s95
      %s98 = sphi 0, %s97
      %s112 = sphi 0, %s98
      %s116 = sphi 0, %s116
      %s118 = sphi 0, %s116
      %s119 = sphi 0, %s118
      %s133 = sphi 0, %s119
      %s137 = sphi 0, %s137
      %s139 = sphi 0, %s137
      %s140 = sphi 0, %s139
      %s154 = sphi 0, %s140
      %s158 = sphi 0, %s158
      %s160 = sphi 0, %s158
      %s161 = sphi 0, %s160
      %s175 = sphi 0, %s161
      %s179 = sphi 0, %s179
      %s181 = sphi 0, %s179
      %s182 = sphi 0, %s181
      %s196 = sphi 0, %s182
      %s200 = sphi 0, %s200
      %s202 = sphi 0, %s200
      %s203 = sphi 0, %s202
      %s217 = sphi 0, %s203
      %s223 = sphi 0, %s225
      %s226 = sphi 0, %s223
      %s227 = sphi 0, %s226
      %s243 = sphi 0, %s227
    $region4: #{tpu_custom_call.1} parent=1 // loop_header_branch
      %22 = sbr.rel (%p20) target = $region8
    $region5: #{tpu_custom_call.1} parent=1 // loop_body
      %s24 = ssub.s32 %s19, 1
      %s25 = ssub.s32 %s19, 2
      %s26 = sadd.s32 %s19, 1
      %s27 = ssub.s32 %s19, %s26
      %p28 = scmp.eq.s32.totalorder %s27, 0
      %s30 = sadd.s32 %s29, 1
      %s31 = scalar_select %p28, %s29, %s30
      %p34 = pneg %p28
      %p35 = scmp.eq.s32.totalorder %s19, 1
      %p36 = por %p34, %p35
      %p37 = scmp.ne.s32.totalorder %s29, %s32
      %p38 = scmp.eq.s32.totalorder %s19, 0
      %p39 = por %p37, %p38
      %p40 = scmp.ne.s32.totalorder %s29, %s32
      %p41 = scmp.eq.s32.totalorder %s24, 1
      %p42 = por %p40, %p41
      %p43 = scmp.ne.s32.totalorder %s32, %s33
      %p44 = scmp.eq.s32.totalorder %s24, 0
      %p45 = por %p43, %p44
      %p46 = scmp.ne.s32.totalorder %s32, %s33
      %p47 = scmp.eq.s32.totalorder %s25, 1
      %p48 = por %p46, %p47
      %p50 = scmp.ne.s32.totalorder %s33, %s49
      %p51 = scmp.eq.s32.totalorder %s25, 0
      %p52 = por %p50, %p51
      %s54 = sadd.s32 %s53, 1
      %p57 = scmp.eq.s32.totalorder %s19, 1
      %p58 = scmp.ne.s32.totalorder %s53, %s55
      %p59 = scmp.eq.s32.totalorder %s19, 0
      %p60 = por %p58, %p59
      %p61 = scmp.ne.s32.totalorder %s53, %s55
      %p62 = scmp.eq.s32.totalorder %s24, 1
      %p63 = por %p61, %p62
      %p64 = scmp.ne.s32.totalorder %s55, %s56
      %p65 = scmp.eq.s32.totalorder %s24, 0
      %p66 = por %p64, %p65
      %p67 = scmp.ne.s32.totalorder %s55, %s56
      %p68 = scmp.eq.s32.totalorder %s25, 1
      %p69 = por %p67, %p68
      %p71 = scmp.ne.s32.totalorder %s56, %s70
      %p72 = scmp.eq.s32.totalorder %s25, 0
      %p73 = por %p71, %p72
      %s75 = sadd.s32 %s74, 1
      %p78 = scmp.eq.s32.totalorder %s19, 1
      %p79 = scmp.ne.s32.totalorder %s74, %s76
      %p80 = scmp.eq.s32.totalorder %s19, 0
      %p81 = por %p79, %p80
      %p82 = scmp.ne.s32.totalorder %s74, %s76
      %p83 = scmp.eq.s32.totalorder %s24, 1
      %p84 = por %p82, %p83
      %p85 = scmp.ne.s32.totalorder %s76, %s77
      %p86 = scmp.eq.s32.totalorder %s24, 0
      %p87 = por %p85, %p86
      %p88 = scmp.ne.s32.totalorder %s76, %s77
      %p89 = scmp.eq.s32.totalorder %s25, 1
      %p90 = por %p88, %p89
      %p92 = scmp.ne.s32.totalorder %s77, %s91
      %p93 = scmp.eq.s32.totalorder %s25, 0
      %p94 = por %p92, %p93
      %s96 = sadd.s32 %s95, 1
      %p99 = scmp.eq.s32.totalorder %s19, 1
      %p100 = scmp.ne.s32.totalorder %s95, %s97
      %p101 = scmp.eq.s32.totalorder %s19, 0
      %p102 = por %p100, %p101
      %p103 = scmp.ne.s32.totalorder %s95, %s97
      %p104 = scmp.eq.s32.totalorder %s24, 1
      %p105 = por %p103, %p104
      %p106 = scmp.ne.s32.totalorder %s97, %s98
      %p107 = scmp.eq.s32.totalorder %s24, 0
      %p108 = por %p106, %p107
      %p109 = scmp.ne.s32.totalorder %s97, %s98
      %p110 = scmp.eq.s32.totalorder %s25, 1
      %p111 = por %p109, %p110
      %p113 = scmp.ne.s32.totalorder %s98, %s112
      %p114 = scmp.eq.s32.totalorder %s25, 0
      %p115 = por %p113, %p114
      %s117 = sadd.s32 %s116, 1
      %p120 = scmp.eq.s32.totalorder %s19, 1
      %p121 = scmp.ne.s32.totalorder %s116, %s118
      %p122 = scmp.eq.s32.totalorder %s19, 0
      %p123 = por %p121, %p122
      %p124 = scmp.ne.s32.totalorder %s116, %s118
      %p125 = scmp.eq.s32.totalorder %s24, 1
      %p126 = por %p124, %p125
      %p127 = scmp.ne.s32.totalorder %s118, %s119
      %p128 = scmp.eq.s32.totalorder %s24, 0
      %p129 = por %p127, %p128
      %p130 = scmp.ne.s32.totalorder %s118, %s119
      %p131 = scmp.eq.s32.totalorder %s25, 1
      %p132 = por %p130, %p131
      %p134 = scmp.ne.s32.totalorder %s119, %s133
      %p135 = scmp.eq.s32.totalorder %s25, 0
      %p136 = por %p134, %p135
      %s138 = sadd.s32 %s137, 1
      %p141 = scmp.eq.s32.totalorder %s19, 1
      %p142 = scmp.ne.s32.totalorder %s137, %s139
      %p143 = scmp.eq.s32.totalorder %s19, 0
      %p144 = por %p142, %p143
      %p145 = scmp.ne.s32.totalorder %s137, %s139
      %p146 = scmp.eq.s32.totalorder %s24, 1
      %p147 = por %p145, %p146
      %p148 = scmp.ne.s32.totalorder %s139, %s140
      %p149 = scmp.eq.s32.totalorder %s24, 0
      %p150 = por %p148, %p149
      %p151 = scmp.ne.s32.totalorder %s139, %s140
      %p152 = scmp.eq.s32.totalorder %s25, 1
      %p153 = por %p151, %p152
      %p155 = scmp.ne.s32.totalorder %s140, %s154
      %p156 = scmp.eq.s32.totalorder %s25, 0
      %p157 = por %p155, %p156
      %s159 = sadd.s32 %s158, 1
      %p162 = scmp.eq.s32.totalorder %s19, 1
      %p163 = scmp.ne.s32.totalorder %s158, %s160
      %p164 = scmp.eq.s32.totalorder %s19, 0
      %p165 = por %p163, %p164
      %p166 = scmp.ne.s32.totalorder %s158, %s160
      %p167 = scmp.eq.s32.totalorder %s24, 1
      %p168 = por %p166, %p167
      %p169 = scmp.ne.s32.totalorder %s160, %s161
      %p170 = scmp.eq.s32.totalorder %s24, 0
      %p171 = por %p169, %p170
      %p172 = scmp.ne.s32.totalorder %s160, %s161
      %p173 = scmp.eq.s32.totalorder %s25, 1
      %p174 = por %p172, %p173
      %p176 = scmp.ne.s32.totalorder %s161, %s175
      %p177 = scmp.eq.s32.totalorder %s25, 0
      %p178 = por %p176, %p177
      %s180 = sadd.s32 %s179, 1
      %p183 = scmp.eq.s32.totalorder %s19, 1
      %p184 = scmp.ne.s32.totalorder %s179, %s181
      %p185 = scmp.eq.s32.totalorder %s19, 0
      %p186 = por %p184, %p185
      %p187 = scmp.ne.s32.totalorder %s179, %s181
      %p188 = scmp.eq.s32.totalorder %s24, 1
      %p189 = por %p187, %p188
      %p190 = scmp.ne.s32.totalorder %s181, %s182
      %p191 = scmp.eq.s32.totalorder %s24, 0
      %p192 = por %p190, %p191
      %p193 = scmp.ne.s32.totalorder %s181, %s182
      %p194 = scmp.eq.s32.totalorder %s25, 1
      %p195 = por %p193, %p194
      %p197 = scmp.ne.s32.totalorder %s182, %s196
      %p198 = scmp.eq.s32.totalorder %s25, 0
      %p199 = por %p197, %p198
      %s201 = sadd.s32 %s200, 1
      %p204 = scmp.eq.s32.totalorder %s19, 1
      %p205 = scmp.ne.s32.totalorder %s200, %s202
      %p206 = scmp.eq.s32.totalorder %s19, 0
      %p207 = por %p205, %p206
      %p208 = scmp.ne.s32.totalorder %s200, %s202
      %p209 = scmp.eq.s32.totalorder %s24, 1
      %p210 = por %p208, %p209
      %p211 = scmp.ne.s32.totalorder %s202, %s203
      %p212 = scmp.eq.s32.totalorder %s24, 0
      %p213 = por %p211, %p212
      %p214 = scmp.ne.s32.totalorder %s202, %s203
      %p215 = scmp.eq.s32.totalorder %s25, 1
      %p216 = por %p214, %p215
      %p218 = scmp.ne.s32.totalorder %s203, %s217
      %p219 = scmp.eq.s32.totalorder %s25, 0
      %p220 = por %p218, %p219
      %s221 = ssub.s32 %s19, %s26
      %p222 = scmp.eq.s32.totalorder %s221, 0
      %s224 = sadd.s32 %s223, 1
      %s225 = scalar_select %p222, %s223, %s224
      %p228 = pneg %p222
      %p229 = scmp.eq.s32.totalorder %s19, 1
      %p230 = por %p228, %p229
      %p231 = scmp.ne.s32.totalorder %s223, %s226
      %p232 = scmp.eq.s32.totalorder %s19, 0
      %p233 = por %p231, %p232
      %p234 = scmp.ne.s32.totalorder %s223, %s226
      %p235 = scmp.eq.s32.totalorder %s24, 1
      %p236 = por %p234, %p235
      %p237 = scmp.ne.s32.totalorder %s226, %s227
      %p238 = scmp.eq.s32.totalorder %s24, 0
      %p239 = por %p237, %p238
      %p240 = scmp.ne.s32.totalorder %s226, %s227
      %p241 = scmp.eq.s32.totalorder %s25, 1
      %p242 = por %p240, %p241
      %p244 = scmp.ne.s32.totalorder %s227, %s243
      %p245 = scmp.eq.s32.totalorder %s25, 0
      %p246 = por %p244, %p245
      %p247 = scmp.le.s32.totalorder 1, %s19
      %p248 = scmp.lt.s32.totalorder %s19, 3
      %p249 = pnand %p247, %p248
      %p250 = pneg %p249
      // Predicated region
      $region9: #{tpu_custom_call.1} parent=5 // pred_check
        _
      $region10: #{tpu_custom_call.1} parent=5 // pred_check_branch
        %252 = sbr.rel (%p249) target = $region12
      $region11: #{tpu_custom_call.1} parent=5 // pred_region
        %s253 = ssub.s32 %s19, 1
        // Predicated region
        $region13: #{tpu_custom_call.1} parent=11 // pred_check
          %p254 = pneg %p66
        $region14: #{tpu_custom_call.1} parent=11 // pred_check_branch
          %256 = sbr.rel (%p254) target = $region16
        $region15: #{tpu_custom_call.1} parent=11 // pred_region
          _
        $region16: #{tpu_custom_call.1} parent=11 // pred_fallthru
          _
        // Predicated region
        $region17: #{tpu_custom_call.1} parent=11 // pred_check
          %p257 = pneg %p87
        $region18: #{tpu_custom_call.1} parent=11 // pred_check_branch
          %259 = sbr.rel (%p257) target = $region20
        $region19: #{tpu_custom_call.1} parent=11 // pred_region
          _
        $region20: #{tpu_custom_call.1} parent=11 // pred_fallthru
          _
        // Predicated region
        $region21: #{tpu_custom_call.1} parent=11 // pred_check
          %p260 = pneg %p108
        $region22: #{tpu_custom_call.1} parent=11 // pred_check_branch
          %262 = sbr.rel (%p260) target = $region24
        $region23: #{tpu_custom_call.1} parent=11 // pred_region
          %264 = vsyncadd [#allocation3], 0
          %s265 = sshll.u32 %s3, 4
          %s266 = int_to_ptr.hbm [resolvable:$true] %s265
          %s267 = sshll.u32 [#allocation2], 4
          %s268 = int_to_ptr.vmem [resolvable:$true] %s267
          %273 = dma.hbm_to_vmem [thread:$0]  %s266, 18944, %s268, [#allocation3], 256, 256, 16
        $region24: #{tpu_custom_call.1} parent=11 // pred_fallthru
          _
        // Predicated region
        $region25: #{tpu_custom_call.1} parent=11 // pred_check
          %p274 = pneg %p129
        $region26: #{tpu_custom_call.1} parent=11 // pred_check_branch
          %276 = sbr.rel (%p274) target = $region28
        $region27: #{tpu_custom_call.1} parent=11 // pred_region
          _
        $region28: #{tpu_custom_call.1} parent=11 // pred_fallthru
          _
        // Predicated region
        $region29: #{tpu_custom_call.1} parent=11 // pred_check
          %p277 = pneg %p150
        $region30: #{tpu_custom_call.1} parent=11 // pred_check_branch
          %279 = sbr.rel (%p277) target = $region32
        $region31: #{tpu_custom_call.1} parent=11 // pred_region
          _
        $region32: #{tpu_custom_call.1} parent=11 // pred_fallthru
          _
        // Predicated region
        $region33: #{tpu_custom_call.1} parent=11 // pred_check
          %p280 = pneg %p171
        $region34: #{tpu_custom_call.1} parent=11 // pred_check_branch
          %282 = sbr.rel (%p280) target = $region36
        $region35: #{tpu_custom_call.1} parent=11 // pred_region
          _
        $region36: #{tpu_custom_call.1} parent=11 // pred_fallthru
          _
        // Predicated region
        $region37: #{tpu_custom_call.1} parent=11 // pred_check
          %p283 = pneg %p192
        $region38: #{tpu_custom_call.1} parent=11 // pred_check_branch
          %285 = sbr.rel (%p283) target = $region40
        $region39: #{tpu_custom_call.1} parent=11 // pred_region
          _
        $region40: #{tpu_custom_call.1} parent=11 // pred_fallthru
          _
        // Predicated region
        $region41: #{tpu_custom_call.1} parent=11 // pred_check
          %p286 = pneg %p213
        $region42: #{tpu_custom_call.1} parent=11 // pred_check_branch
          %288 = sbr.rel (%p286) target = $region44
        $region43: #{tpu_custom_call.1} parent=11 // pred_region
          _
        $region44: #{tpu_custom_call.1} parent=11 // pred_fallthru
          _
      $region12: #{tpu_custom_call.1} parent=5 // pred_fallthru
        _
      %p289 = scmp.lt.s32.totalorder %s19, 2
      // Predicated region
      $region45: #{tpu_custom_call.1} parent=5 // pred_check
        %p290 = pneg %p289
      $region46: #{tpu_custom_call.1} parent=5 // pred_check_branch
        %292 = sbr.rel (%p290) target = $region48
      $region47: #{tpu_custom_call.1} parent=5 // pred_region
        // Predicated region
        $region49: #{tpu_custom_call.1} parent=47 // pred_check
          %p293 = pneg %p39
        $region50: #{tpu_custom_call.1} parent=47 // pred_check_branch
          %295 = sbr.rel (%p293) target = $region52
        $region51: #{tpu_custom_call.1} parent=47 // pred_region
          %p296 = scmp.lt.s32.totalorder %s19, 1
          %s297 = scalar_select %p296, %s19, 1
          %s298 = smul.addr %s297, 5
          %s299 = smul.addr %s298, 8
          %s300 = scalar_lea.vmem %s0, %s299
        $region52: #{tpu_custom_call.1} parent=47 // pred_fallthru
          _
      $region48: #{tpu_custom_call.1} parent=5 // pred_fallthru
        _
      %p301 = scmp.le.s32.totalorder 1, %s19
      %p302 = scmp.lt.s32.totalorder %s19, 3
      %p303 = pnand %p301, %p302
      %p304 = pneg %p303
      // Predicated region
      $region53: #{tpu_custom_call.1} parent=5 // pred_check
        _
      $region54: #{tpu_custom_call.1} parent=5 // pred_check_branch
        %306 = sbr.rel (%p303) target = $region56
      $region55: #{tpu_custom_call.1} parent=5 // pred_region
        %s307 = ssub.s32 %s19, 1
        // Predicated region
        $region57: #{tpu_custom_call.1} parent=55 // pred_check
          %p308 = pneg %p108
        $region58: #{tpu_custom_call.1} parent=55 // pred_check_branch
          %310 = sbr.rel (%p308) target = $region60
        $region59: #{tpu_custom_call.1} parent=55 // pred_region
          %312 = dma.done [#allocation3], 18944
        $region60: #{tpu_custom_call.1} parent=55 // pred_fallthru
          _
        %p313 = scmp.lt.s32.totalorder %s24, 1
        %s314 = scalar_select %p313, %s24, 1
        %s315 = smul.addr %s314, 5
        %s316 = smul.addr %s315, 8
        %s317 = scalar_lea.vmem %s0, %s316
        %p318 = pneg %p45
        %p319 = pneg %p42
        %p320 = pneg %p66
        %p321 = pneg %p63
        %p322 = pneg %p87
        %p323 = pneg %p84
        %p324 = pneg %p108
        %p325 = pneg %p105
        %p326 = pneg %p129
        %p327 = pneg %p126
        %p328 = pneg %p150
        %p329 = pneg %p147
        %p330 = pneg %p171
        %p331 = pneg %p168
        %p332 = pneg %p192
        %p333 = pneg %p189
        %p334 = pneg %p213
        %p335 = pneg %p210
        %p336 = pneg %p239
        %p337 = pneg %p236
        %s338 = sand.u32 %s226, 1
        %s339 = scalar_lea.sflag [#allocation4], %s338
        %s340 = sand.u32 %s226, 1
        %s341 = scalar_lea.vmem [#allocation5], %s340
        %p342 = scmp.lt.s32.totalorder %s24, 1
        %s343 = scalar_select %p342, %s24, 1
        %s344 = smul.addr %s343, 5
        %s345 = smul.addr %s344, 8
        %s346 = scalar_lea.vmem %s0, %s345
        %v347 = vld [vmem:[%s346] sm:$0xff]
        %v348 = vld [vmem:[%s346 + $0x8] sm:$0xff]
        %v349 = vld [vmem:[%s346 + $0x10] sm:$0xff]
        %v350 = vld [vmem:[%s346 + $0x18] sm:$0xff]
        %v351 = vld [vmem:[%s346 + $0x20] sm:$0xff]
        %357 = vrot.lane.b32.xlu0 %v347, 127
        %v358 = vpop.permute.xlu0 %357
        %359 = vrot.lane.b32.xlu0 %v348, 127
        %v360 = vpop.permute.xlu0 %359
        %361 = vrot.lane.b32.xlu0 %v349, 127
        %v362 = vpop.permute.xlu0 %361
        %363 = vrot.lane.b32.xlu0 %v350, 127
        %v364 = vpop.permute.xlu0 %363
        %365 = vrot.lane.b32.xlu0 %v351, 127
        %v366 = vpop.permute.xlu0 %365
        %vm367 = vcmask 1039360
        %v368 = vsel %vm367, %v358, %v360
        %v369 = vsel %vm367, %v360, %v362
        %v370 = vsel %vm367, %v362, %v364
        %v371 = vsel %vm367, %v364, %v366
        %377 = vrot.lane.b32.xlu0 %v347, 126
        %v378 = vpop.permute.xlu0 %377
        %379 = vrot.lane.b32.xlu0 %v348, 126
        %v380 = vpop.permute.xlu0 %379
        %381 = vrot.lane.b32.xlu0 %v349, 126
        %v382 = vpop.permute.xlu0 %381
        %383 = vrot.lane.b32.xlu0 %v350, 126
        %v384 = vpop.permute.xlu0 %383
        %385 = vrot.lane.b32.xlu0 %v351, 126
        %v386 = vpop.permute.xlu0 %385
        %vm387 = vcmask 1031168
        %v388 = vsel %vm387, %v378, %v380
        %v389 = vsel %vm387, %v380, %v382
        %v390 = vsel %vm387, %v382, %v384
        %v391 = vsel %vm387, %v384, %v386
        %397 = vrot.lane.b32.xlu0 %v347, 125
        %v398 = vpop.permute.xlu0 %397
        %399 = vrot.lane.b32.xlu0 %v348, 125
        %v400 = vpop.permute.xlu0 %399
        %401 = vrot.lane.b32.xlu0 %v349, 125
        %v402 = vpop.permute.xlu0 %401
        %403 = vrot.lane.b32.xlu0 %v350, 125
        %v404 = vpop.permute.xlu0 %403
        %405 = vrot.lane.b32.xlu0 %v351, 125
        %v406 = vpop.permute.xlu0 %405
        %vm407 = vcmask 1022976
        %v408 = vsel %vm407, %v398, %v400
        %v409 = vsel %vm407, %v400, %v402
        %v410 = vsel %vm407, %v402, %v404
        %v411 = vsel %vm407, %v404, %v406
        %417 = vrot.lane.b32.xlu0 %v347, 124
        %v418 = vpop.permute.xlu0 %417
        %419 = vrot.lane.b32.xlu0 %v348, 124
        %v420 = vpop.permute.xlu0 %419
        %421 = vrot.lane.b32.xlu0 %v349, 124
        %v422 = vpop.permute.xlu0 %421
        %423 = vrot.lane.b32.xlu0 %v350, 124
        %v424 = vpop.permute.xlu0 %423
        %425 = vrot.lane.b32.xlu0 %v351, 124
        %v426 = vpop.permute.xlu0 %425
        %vm427 = vcmask 1014784
        %v428 = vsel %vm427, %v418, %v420
        %v429 = vsel %vm427, %v420, %v422
        %v430 = vsel %vm427, %v422, %v424
        %v431 = vsel %vm427, %v424, %v426
        %437 = vrot.lane.b32.xlu0 %v347, 123
        %v438 = vpop.permute.xlu0 %437
        %439 = vrot.lane.b32.xlu0 %v348, 123
        %v440 = vpop.permute.xlu0 %439
        %441 = vrot.lane.b32.xlu0 %v349, 123
        %v442 = vpop.permute.xlu0 %441
        %443 = vrot.lane.b32.xlu0 %v350, 123
        %v444 = vpop.permute.xlu0 %443
        %445 = vrot.lane.b32.xlu0 %v351, 123
        %v446 = vpop.permute.xlu0 %445
        %vm447 = vcmask 1006592
        %v448 = vsel %vm447, %v438, %v440
        %v449 = vsel %vm447, %v440, %v442
        %v450 = vsel %vm447, %v442, %v444
        %v451 = vsel %vm447, %v444, %v446
        %457 = vrot.lane.b32.xlu0 %v347, 122
        %v458 = vpop.permute.xlu0 %457
        %459 = vrot.lane.b32.xlu0 %v348, 122
        %v460 = vpop.permute.xlu0 %459
        %461 = vrot.lane.b32.xlu0 %v349, 122
        %v462 = vpop.permute.xlu0 %461
        %463 = vrot.lane.b32.xlu0 %v350, 122
        %v464 = vpop.permute.xlu0 %463
        %465 = vrot.lane.b32.xlu0 %v351, 122
        %v466 = vpop.permute.xlu0 %465
        %vm467 = vcmask 998400
        %v468 = vsel %vm467, %v458, %v460
        %v469 = vsel %vm467, %v460, %v462
        %v470 = vsel %vm467, %v462, %v464
        %v471 = vsel %vm467, %v464, %v466
        %477 = vrot.lane.b32.xlu0 %v347, 121
        %v478 = vpop.permute.xlu0 %477
        %479 = vrot.lane.b32.xlu0 %v348, 121
        %v480 = vpop.permute.xlu0 %479
        %481 = vrot.lane.b32.xlu0 %v349, 121
        %v482 = vpop.permute.xlu0 %481
        %483 = vrot.lane.b32.xlu0 %v350, 121
        %v484 = vpop.permute.xlu0 %483
        %485 = vrot.lane.b32.xlu0 %v351, 121
        %v486 = vpop.permute.xlu0 %485
        %vm487 = vcmask 990208
        %v488 = vsel %vm487, %v478, %v480
        %v489 = vsel %vm487, %v480, %v482
        %v490 = vsel %vm487, %v482, %v484
        %v491 = vsel %vm487, %v484, %v486
        %497 = vrot.lane.b32.xlu0 %v347, 120
        %v498 = vpop.permute.xlu0 %497
        %499 = vrot.lane.b32.xlu0 %v348, 120
        %v500 = vpop.permute.xlu0 %499
        %501 = vrot.lane.b32.xlu0 %v349, 120
        %v502 = vpop.permute.xlu0 %501
        %503 = vrot.lane.b32.xlu0 %v350, 120
        %v504 = vpop.permute.xlu0 %503
        %505 = vrot.lane.b32.xlu0 %v351, 120
        %v506 = vpop.permute.xlu0 %505
        %vm507 = vcmask 982016
        %v508 = vsel %vm507, %v498, %v500
        %v509 = vsel %vm507, %v500, %v502
        %v510 = vsel %vm507, %v502, %v504
        %v511 = vsel %vm507, %v504, %v506
        %v517 = vld [vmem:[%s1] sm:$0xff]
        %v518 = vld [vmem:[%s2] sm:$0xff]
        %520 = vset.pattern.permute.xlu0 0
        %521 = vperm.xlu0 %520, %v518
        %v522 = vpop.permute.xlu0 %521
        %vm524 = vcmask 588800
        %v526 = vsel %vm524, %v517, 0
        %528 = vmatpush.msra.mxu0 0.0
        %529 = vmatpush.msra.mxu0 0.0
        %530 = vmatpush.msra.mxu0 0.0
        %531 = vmatpush.msra.mxu0 0.0
        %532 = vmatpush.msra.mxu0 0.0
        %533 = vmatpush.msra.mxu0 0.0
        %534 = vmatpush.msra.mxu0 0.0
        %535 = vmatpush.msra.mxu0 %v508
        %536 = vmatpush.msra.mxu0 %v488
        %537 = vmatpush.msra.mxu0 %v468
        %538 = vmatpush.msra.mxu0 %v448
        %539 = vmatpush.msra.mxu0 %v428
        %540 = vmatpush.msra.mxu0 %v408
        %541 = vmatpush.msra.mxu0 %v388
        %542 = vmatpush.msra.mxu0 %v368
        %543 = vmatpush.msra.mxu0 %v347
        %544 = vmatmul.f32.gmra.mxu0 %v526
        %v545 = vpop.f32.mrf.mxu0
        %v546 = vadd.f32 %v522, %v545
        %547 = vdwg.mxu0
        %548 = vmatpush.msra.mxu0 0.0
        %549 = vmatpush.msra.mxu0 0.0
        %550 = vmatpush.msra.mxu0 0.0
        %551 = vmatpush.msra.mxu0 0.0
        %552 = vmatpush.msra.mxu0 0.0
        %553 = vmatpush.msra.mxu0 0.0
        %554 = vmatpush.msra.mxu0 0.0
        %555 = vmatpush.msra.mxu0 %v509
        %556 = vmatpush.msra.mxu0 %v489
        %557 = vmatpush.msra.mxu0 %v469
        %558 = vmatpush.msra.mxu0 %v449
        %559 = vmatpush.msra.mxu0 %v429
        %560 = vmatpush.msra.mxu0 %v409
        %561 = vmatpush.msra.mxu0 %v389
        %562 = vmatpush.msra.mxu0 %v369
        %563 = vmatpush.msra.mxu0 %v348
        %564 = vmatmul.f32.gmra.mxu0 %v526
        %v565 = vpop.f32.mrf.mxu0
        %v566 = vadd.f32 %v522, %v565
        %567 = vdwg.mxu0
        %568 = vmatpush.msra.mxu0 0.0
        %569 = vmatpush.msra.mxu0 0.0
        %570 = vmatpush.msra.mxu0 0.0
        %571 = vmatpush.msra.mxu0 0.0
        %572 = vmatpush.msra.mxu0 0.0
        %573 = vmatpush.msra.mxu0 0.0
        %574 = vmatpush.msra.mxu0 0.0
        %575 = vmatpush.msra.mxu0 %v510
        %576 = vmatpush.msra.mxu0 %v490
        %577 = vmatpush.msra.mxu0 %v470
        %578 = vmatpush.msra.mxu0 %v450
        %579 = vmatpush.msra.mxu0 %v430
        %580 = vmatpush.msra.mxu0 %v410
        %581 = vmatpush.msra.mxu0 %v390
        %582 = vmatpush.msra.mxu0 %v370
        %583 = vmatpush.msra.mxu0 %v349
        %584 = vmatmul.f32.gmra.mxu0 %v526
        %v585 = vpop.f32.mrf.mxu0
        %v586 = vadd.f32 %v522, %v585
        %587 = vdwg.mxu0
        %588 = vmatpush.msra.mxu0 0.0
        %589 = vmatpush.msra.mxu0 0.0
        %590 = vmatpush.msra.mxu0 0.0
        %591 = vmatpush.msra.mxu0 0.0
        %592 = vmatpush.msra.mxu0 0.0
        %593 = vmatpush.msra.mxu0 0.0
        %594 = vmatpush.msra.mxu0 0.0
        %595 = vmatpush.msra.mxu0 %v511
        %596 = vmatpush.msra.mxu0 %v491
        %597 = vmatpush.msra.mxu0 %v471
        %598 = vmatpush.msra.mxu0 %v451
        %599 = vmatpush.msra.mxu0 %v431
        %600 = vmatpush.msra.mxu0 %v411
        %601 = vmatpush.msra.mxu0 %v391
        %602 = vmatpush.msra.mxu0 %v371
        %603 = vmatpush.msra.mxu0 %v350
        %604 = vmatmul.f32.gmra.mxu0 %v526
        %v605 = vpop.f32.mrf.mxu0
        %v606 = vadd.f32 %v522, %v605
        %607 = vdwg.mxu0
        %608 = vmatpush.msra.mxu0 0.0
        %609 = vmatpush.msra.mxu0 0.0
        %610 = vmatpush.msra.mxu0 0.0
        %611 = vmatpush.msra.mxu0 0.0
        %612 = vmatpush.msra.mxu0 0.0
        %613 = vmatpush.msra.mxu0 0.0
        %614 = vmatpush.msra.mxu0 0.0
        %615 = vmatpush.msra.mxu0 %v506
        %616 = vmatpush.msra.mxu0 %v486
        %617 = vmatpush.msra.mxu0 %v466
        %618 = vmatpush.msra.mxu0 %v446
        %619 = vmatpush.msra.mxu0 %v426
        %620 = vmatpush.msra.mxu0 %v406
        %621 = vmatpush.msra.mxu0 %v386
        %622 = vmatpush.msra.mxu0 %v366
        %623 = vmatpush.msra.mxu0 %v351
        %624 = vmatmul.f32.gmra.mxu0 %v526
        %v625 = vpop.f32.mrf.mxu0
        %v626 = vadd.f32 %v522, %v625
        %627 = vdwg.mxu0
        %v628 = vmax.f32 %v546, 0.0
        %v629 = vmax.f32 %v566, 0.0
        %v630 = vmax.f32 %v586, 0.0
        %v631 = vmax.f32 %v606, 0.0
        %v632 = vmax.f32 %v626, 0.0
        %v633 = vld [vmem:[#allocation2] sm:$0xff]
        %v634 = vld [vmem:[#allocation2 + $0x8] sm:$0xff]
        %v635 = vld [vmem:[#allocation2 + $0x10] sm:$0xff]
        %v636 = vld [vmem:[#allocation2 + $0x18] sm:$0xff]
        %v637 = vld [vmem:[#allocation2 + $0x20] sm:$0xff]
        %v638 = vld [vmem:[#allocation2 + $0x28] sm:$0xff]
        %v639 = vld [vmem:[#allocation2 + $0x30] sm:$0xff]
        %v640 = vld [vmem:[#allocation2 + $0x38] sm:$0xff]
        %v641 = vld [vmem:[#allocation2 + $0x40] sm:$0xff]
        %v642 = vld [vmem:[#allocation2 + $0x48] sm:$0xff]
        %v643 = vld [vmem:[#allocation2 + $0x50] sm:$0xff]
        %v644 = vld [vmem:[#allocation2 + $0x58] sm:$0xff]
        %v645 = vld [vmem:[#allocation2 + $0x60] sm:$0xff]
        %v646 = vld [vmem:[#allocation2 + $0x68] sm:$0xff]
        %v647 = vld [vmem:[#allocation2 + $0x70] sm:$0xff]
        %v648 = vld [vmem:[#allocation2 + $0x78] sm:$0xff]
        %v649 = vld [vmem:[#allocation2 + $0x80] sm:$0xff]
        %v650 = vld [vmem:[#allocation2 + $0x88] sm:$0xff]
        %v651 = vld [vmem:[#allocation2 + $0x90] sm:$0xff]
        %v652 = vld [vmem:[#allocation2 + $0x98] sm:$0xff]
        %v653 = vld [vmem:[#allocation2 + $0xa0] sm:$0xff]
        %v654 = vld [vmem:[#allocation2 + $0xa8] sm:$0xff]
        %v655 = vld [vmem:[#allocation2 + $0xb0] sm:$0xff]
        %v656 = vld [vmem:[#allocation2 + $0xb8] sm:$0xff]
        %v657 = vld [vmem:[#allocation2 + $0xc0] sm:$0xff]
        %v658 = vld [vmem:[#allocation2 + $0xc8] sm:$0xff]
        %v659 = vld [vmem:[#allocation2 + $0xd0] sm:$0xff]
        %v660 = vld [vmem:[#allocation2 + $0xd8] sm:$0xff]
        %v661 = vld [vmem:[#allocation2 + $0xe0] sm:$0xff]
        %v662 = vld [vmem:[#allocation2 + $0xe8] sm:$0xff]
        %v663 = vld [vmem:[#allocation2 + $0xf0] sm:$0xff]
        %v664 = vld [vmem:[#allocation2 + $0xf8] sm:$0xff]
        %v665 = vld [vmem:[#allocation2 + $0x100] sm:$0xff]
        %v666 = vld [vmem:[#allocation2 + $0x108] sm:$0xff]
        %v667 = vld [vmem:[#allocation2 + $0x110] sm:$0xff]
        %v668 = vld [vmem:[#allocation2 + $0x118] sm:$0xff]
        %v669 = vld [vmem:[#allocation2 + $0x120] sm:$0xff]
        %v670 = vld [vmem:[#allocation2 + $0x128] sm:$0xff]
        %v671 = vld [vmem:[#allocation2 + $0x130] sm:$0xff]
        %v672 = vld [vmem:[#allocation2 + $0x138] sm:$0xff]
        %v673 = vld [vmem:[#allocation2 + $0x140] sm:$0xff]
        %v674 = vld [vmem:[#allocation2 + $0x148] sm:$0xff]
        %v675 = vld [vmem:[#allocation2 + $0x150] sm:$0xff]
        %v676 = vld [vmem:[#allocation2 + $0x158] sm:$0xff]
        %v677 = vld [vmem:[#allocation2 + $0x160] sm:$0xff]
        %v678 = vld [vmem:[#allocation2 + $0x168] sm:$0xff]
        %v679 = vld [vmem:[#allocation2 + $0x170] sm:$0xff]
        %v680 = vld [vmem:[#allocation2 + $0x178] sm:$0xff]
        %v681 = vld [vmem:[#allocation2 + $0x180] sm:$0xff]
        %v682 = vld [vmem:[#allocation2 + $0x188] sm:$0xff]
        %v683 = vld [vmem:[#allocation2 + $0x190] sm:$0xff]
        %v684 = vld [vmem:[#allocation2 + $0x198] sm:$0xff]
        %v685 = vld [vmem:[#allocation2 + $0x1a0] sm:$0xff]
        %v686 = vld [vmem:[#allocation2 + $0x1a8] sm:$0xff]
        %v687 = vld [vmem:[#allocation2 + $0x1b0] sm:$0xff]
        %v688 = vld [vmem:[#allocation2 + $0x1b8] sm:$0xff]
        %v689 = vld [vmem:[#allocation2 + $0x1c0] sm:$0xff]
        %v690 = vld [vmem:[#allocation2 + $0x1c8] sm:$0xff]
        %v691 = vld [vmem:[#allocation2 + $0x1d0] sm:$0xff]
        %v692 = vld [vmem:[#allocation2 + $0x1d8] sm:$0xff]
        %v693 = vld [vmem:[#allocation2 + $0x1e0] sm:$0xff]
        %v694 = vld [vmem:[#allocation2 + $0x1e8] sm:$0xff]
        %v695 = vld [vmem:[#allocation2 + $0x1f0] sm:$0xff]
        %v696 = vld [vmem:[#allocation2 + $0x1f8] sm:$0xff]
        %v697 = vld [vmem:[#allocation2 + $0x200] sm:$0xff]
        %v698 = vld [vmem:[#allocation2 + $0x208] sm:$0xff]
        %v699 = vld [vmem:[#allocation2 + $0x210] sm:$0xff]
        %v700 = vld [vmem:[#allocation2 + $0x218] sm:$0xff]
        %v701 = vld [vmem:[#allocation2 + $0x220] sm:$0xff]
        %v702 = vld [vmem:[#allocation2 + $0x228] sm:$0xff]
        %v703 = vld [vmem:[#allocation2 + $0x230] sm:$0xff]
        %v704 = vld [vmem:[#allocation2 + $0x238] sm:$0xff]
        %v705 = vld [vmem:[#allocation2 + $0x240] sm:$0xff]
        %v706 = vld [vmem:[#allocation2 + $0x248] sm:$0xff]
        %v707 = vld [vmem:[#allocation2 + $0x250] sm:$0xff]
        %v708 = vld [vmem:[#allocation2 + $0x258] sm:$0xff]
        %v709 = vld [vmem:[#allocation2 + $0x260] sm:$0xff]
        %v710 = vld [vmem:[#allocation2 + $0x268] sm:$0xff]
        %v711 = vld [vmem:[#allocation2 + $0x270] sm:$0xff]
        %v712 = vld [vmem:[#allocation2 + $0x278] sm:$0xff]
        %v713 = vld [vmem:[#allocation2 + $0x280] sm:$0xff]
        %v714 = vld [vmem:[#allocation2 + $0x288] sm:$0xff]
        %v715 = vld [vmem:[#allocation2 + $0x290] sm:$0xff]
        %v716 = vld [vmem:[#allocation2 + $0x298] sm:$0xff]
        %v717 = vld [vmem:[#allocation2 + $0x2a0] sm:$0xff]
        %v718 = vld [vmem:[#allocation2 + $0x2a8] sm:$0xff]
        %v719 = vld [vmem:[#allocation2 + $0x2b0] sm:$0xff]
        %v720 = vld [vmem:[#allocation2 + $0x2b8] sm:$0xff]
        %v721 = vld [vmem:[#allocation2 + $0x2c0] sm:$0xff]
        %v722 = vld [vmem:[#allocation2 + $0x2c8] sm:$0xff]
        %v723 = vld [vmem:[#allocation2 + $0x2d0] sm:$0xff]
        %v724 = vld [vmem:[#allocation2 + $0x2d8] sm:$0xff]
        %v725 = vld [vmem:[#allocation2 + $0x2e0] sm:$0xff]
        %v726 = vld [vmem:[#allocation2 + $0x2e8] sm:$0xff]
        %v727 = vld [vmem:[#allocation2 + $0x2f0] sm:$0xff]
        %v728 = vld [vmem:[#allocation2 + $0x2f8] sm:$0xff]
        %v729 = vld [vmem:[#allocation2 + $0x300] sm:$0xff]
        %v730 = vld [vmem:[#allocation2 + $0x308] sm:$0xff]
        %v731 = vld [vmem:[#allocation2 + $0x310] sm:$0xff]
        %v732 = vld [vmem:[#allocation2 + $0x318] sm:$0xff]
        %v733 = vld [vmem:[#allocation2 + $0x320] sm:$0xff]
        %v734 = vld [vmem:[#allocation2 + $0x328] sm:$0xff]
        %v735 = vld [vmem:[#allocation2 + $0x330] sm:$0xff]
        %v736 = vld [vmem:[#allocation2 + $0x338] sm:$0xff]
        %v737 = vld [vmem:[#allocation2 + $0x340] sm:$0xff]
        %v738 = vld [vmem:[#allocation2 + $0x348] sm:$0xff]
        %v739 = vld [vmem:[#allocation2 + $0x350] sm:$0xff]
        %v740 = vld [vmem:[#allocation2 + $0x358] sm:$0xff]
        %v741 = vld [vmem:[#allocation2 + $0x360] sm:$0xff]
        %v742 = vld [vmem:[#allocation2 + $0x368] sm:$0xff]
        %v743 = vld [vmem:[#allocation2 + $0x370] sm:$0xff]
        %v744 = vld [vmem:[#allocation2 + $0x378] sm:$0xff]
        %v745 = vld [vmem:[#allocation2 + $0x380] sm:$0xff]
        %v746 = vld [vmem:[#allocation2 + $0x388] sm:$0xff]
        %v747 = vld [vmem:[#allocation2 + $0x390] sm:$0xff]
        %v748 = vld [vmem:[#allocation2 + $0x398] sm:$0xff]
        %v749 = vld [vmem:[#allocation2 + $0x3a0] sm:$0xff]
        %v750 = vld [vmem:[#allocation2 + $0x3a8] sm:$0xff]
        %v751 = vld [vmem:[#allocation2 + $0x3b0] sm:$0xff]
        %v752 = vld [vmem:[#allocation2 + $0x3b8] sm:$0xff]
        %v753 = vld [vmem:[#allocation2 + $0x3c0] sm:$0xff]
        %v754 = vld [vmem:[#allocation2 + $0x3c8] sm:$0xff]
        %v755 = vld [vmem:[#allocation2 + $0x3d0] sm:$0xff]
        %v756 = vld [vmem:[#allocation2 + $0x3d8] sm:$0xff]
        %v757 = vld [vmem:[#allocation2 + $0x3e0] sm:$0xff]
        %v758 = vld [vmem:[#allocation2 + $0x3e8] sm:$0xff]
        %v759 = vld [vmem:[#allocation2 + $0x3f0] sm:$0xff]
        %v760 = vld [vmem:[#allocation2 + $0x3f8] sm:$0xff]
        %v761 = vld [vmem:[#allocation2 + $0x400] sm:$0xff]
        %v762 = vld [vmem:[#allocation2 + $0x408] sm:$0xff]
        %v763 = vld [vmem:[#allocation2 + $0x410] sm:$0xff]
        %v764 = vld [vmem:[#allocation2 + $0x418] sm:$0xff]
        %v765 = vld [vmem:[#allocation2 + $0x420] sm:$0xff]
        %v766 = vld [vmem:[#allocation2 + $0x428] sm:$0xff]
        %v767 = vld [vmem:[#allocation2 + $0x430] sm:$0xff]
        %v768 = vld [vmem:[#allocation2 + $0x438] sm:$0xff]
        %v769 = vld [vmem:[#allocation2 + $0x440] sm:$0xff]
        %v770 = vld [vmem:[#allocation2 + $0x448] sm:$0xff]
        %v771 = vld [vmem:[#allocation2 + $0x450] sm:$0xff]
        %v772 = vld [vmem:[#allocation2 + $0x458] sm:$0xff]
        %v773 = vld [vmem:[#allocation2 + $0x460] sm:$0xff]
        %v774 = vld [vmem:[#allocation2 + $0x468] sm:$0xff]
        %v775 = vld [vmem:[#allocation2 + $0x470] sm:$0xff]
        %v776 = vld [vmem:[#allocation2 + $0x478] sm:$0xff]
        %v777 = vld [vmem:[#allocation2 + $0x480] sm:$0xff]
        %v778 = vld [vmem:[#allocation2 + $0x488] sm:$0xff]
        %v779 = vld [vmem:[#allocation2 + $0x490] sm:$0xff]
        %v780 = vld [vmem:[#allocation2 + $0x498] sm:$0xff]
        %vm781 = vcmask 654336
        %v783 = vsel %vm781, %v632, 0
        %785 = vmatpush.msra.mxu0 %v663
        %786 = vmatpush.msra.mxu0 %v661
        %787 = vmatpush.msra.mxu0 %v659
        %788 = vmatpush.msra.mxu0 %v657
        %789 = vmatpush.msra.mxu0 %v655
        %790 = vmatpush.msra.mxu0 %v653
        %791 = vmatpush.msra.mxu0 %v651
        %792 = vmatpush.msra.mxu0 %v649
        %793 = vmatpush.msra.mxu0 %v647
        %794 = vmatpush.msra.mxu0 %v645
        %795 = vmatpush.msra.mxu0 %v643
        %796 = vmatpush.msra.mxu0 %v641
        %797 = vmatpush.msra.mxu0 %v639
        %798 = vmatpush.msra.mxu0 %v637
        %799 = vmatpush.msra.mxu0 %v635
        %800 = vmatpush.msra.mxu0 %v633
        %801 = vmatmul.f32.gmra.mxu0 %v628
        %v802 = vpop.f32.mrf.mxu0
        %v803 = vadd.f32 0.0, %v802
        %804 = vdwg.mxu0
        %805 = vmatpush.msra.mxu0 %v695
        %806 = vmatpush.msra.mxu0 %v693
        %807 = vmatpush.msra.mxu0 %v691
        %808 = vmatpush.msra.mxu0 %v689
        %809 = vmatpush.msra.mxu0 %v687
        %810 = vmatpush.msra.mxu0 %v685
        %811 = vmatpush.msra.mxu0 %v683
        %812 = vmatpush.msra.mxu0 %v681
        %813 = vmatpush.msra.mxu0 %v679
        %814 = vmatpush.msra.mxu0 %v677
        %815 = vmatpush.msra.mxu0 %v675
        %816 = vmatpush.msra.mxu0 %v673
        %817 = vmatpush.msra.mxu0 %v671
        %818 = vmatpush.msra.mxu0 %v669
        %819 = vmatpush.msra.mxu0 %v667
        %820 = vmatpush.msra.mxu0 %v665
        %821 = vmatmul.f32.gmra.mxu0 %v629
        %v822 = vpop.f32.mrf.mxu0
        %v823 = vadd.f32 %v803, %v822
        %824 = vdwg.mxu0
        %825 = vmatpush.msra.mxu0 %v727
        %826 = vmatpush.msra.mxu0 %v725
        %827 = vmatpush.msra.mxu0 %v723
        %828 = vmatpush.msra.mxu0 %v721
        %829 = vmatpush.msra.mxu0 %v719
        %830 = vmatpush.msra.mxu0 %v717
        %831 = vmatpush.msra.mxu0 %v715
        %832 = vmatpush.msra.mxu0 %v713
        %833 = vmatpush.msra.mxu0 %v711
        %834 = vmatpush.msra.mxu0 %v709
        %835 = vmatpush.msra.mxu0 %v707
        %836 = vmatpush.msra.mxu0 %v705
        %837 = vmatpush.msra.mxu0 %v703
        %838 = vmatpush.msra.mxu0 %v701
        %839 = vmatpush.msra.mxu0 %v699
        %840 = vmatpush.msra.mxu0 %v697
        %841 = vmatmul.f32.gmra.mxu0 %v630
        %v842 = vpop.f32.mrf.mxu0
        %v843 = vadd.f32 %v823, %v842
        %844 = vdwg.mxu0
        %845 = vmatpush.msra.mxu0 %v759
        %846 = vmatpush.msra.mxu0 %v757
        %847 = vmatpush.msra.mxu0 %v755
        %848 = vmatpush.msra.mxu0 %v753
        %849 = vmatpush.msra.mxu0 %v751
        %850 = vmatpush.msra.mxu0 %v749
        %851 = vmatpush.msra.mxu0 %v747
        %852 = vmatpush.msra.mxu0 %v745
        %853 = vmatpush.msra.mxu0 %v743
        %854 = vmatpush.msra.mxu0 %v741
        %855 = vmatpush.msra.mxu0 %v739
        %856 = vmatpush.msra.mxu0 %v737
        %857 = vmatpush.msra.mxu0 %v735
        %858 = vmatpush.msra.mxu0 %v733
        %859 = vmatpush.msra.mxu0 %v731
        %860 = vmatpush.msra.mxu0 %v729
        %861 = vmatmul.f32.gmra.mxu0 %v631
        %v862 = vpop.f32.mrf.mxu0
        %v863 = vadd.f32 %v843, %v862
        %864 = vdwg.mxu0
        %865 = vmatpush.msra.mxu0 0.0
        %866 = vmatpush.msra.mxu0 0.0
        %867 = vmatpush.msra.mxu0 0.0
        %868 = vmatpush.msra.mxu0 0.0
        %869 = vmatpush.msra.mxu0 0.0
        %870 = vmatpush.msra.mxu0 0.0
        %871 = vmatpush.msra.mxu0 %v779
        %872 = vmatpush.msra.mxu0 %v777
        %873 = vmatpush.msra.mxu0 %v775
        %874 = vmatpush.msra.mxu0 %v773
        %875 = vmatpush.msra.mxu0 %v771
        %876 = vmatpush.msra.mxu0 %v769
        %877 = vmatpush.msra.mxu0 %v767
        %878 = vmatpush.msra.mxu0 %v765
        %879 = vmatpush.msra.mxu0 %v763
        %880 = vmatpush.msra.mxu0 %v761
        %881 = vmatmul.f32.gmra.mxu0 %v783
        %v882 = vpop.f32.mrf.mxu0
        %v883 = vadd.f32 %v863, %v882
        %884 = vdwg.mxu0
        %885 = vmatpush.msra.mxu0 %v664
        %886 = vmatpush.msra.mxu0 %v662
        %887 = vmatpush.msra.mxu0 %v660
        %888 = vmatpush.msra.mxu0 %v658
        %889 = vmatpush.msra.mxu0 %v656
        %890 = vmatpush.msra.mxu0 %v654
        %891 = vmatpush.msra.mxu0 %v652
        %892 = vmatpush.msra.mxu0 %v650
        %893 = vmatpush.msra.mxu0 %v648
        %894 = vmatpush.msra.mxu0 %v646
        %895 = vmatpush.msra.mxu0 %v644
        %896 = vmatpush.msra.mxu0 %v642
        %897 = vmatpush.msra.mxu0 %v640
        %898 = vmatpush.msra.mxu0 %v638
        %899 = vmatpush.msra.mxu0 %v636
        %900 = vmatpush.msra.mxu0 %v634
        %901 = vmatmul.f32.gmra.mxu0 %v628
        %v902 = vpop.f32.mrf.mxu0
        %v903 = vadd.f32 0.0, %v902
        %904 = vdwg.mxu0
        %905 = vmatpush.msra.mxu0 %v696
        %906 = vmatpush.msra.mxu0 %v694
        %907 = vmatpush.msra.mxu0 %v692
        %908 = vmatpush.msra.mxu0 %v690
        %909 = vmatpush.msra.mxu0 %v688
        %910 = vmatpush.msra.mxu0 %v686
        %911 = vmatpush.msra.mxu0 %v684
        %912 = vmatpush.msra.mxu0 %v682
        %913 = vmatpush.msra.mxu0 %v680
        %914 = vmatpush.msra.mxu0 %v678
        %915 = vmatpush.msra.mxu0 %v676
        %916 = vmatpush.msra.mxu0 %v674
        %917 = vmatpush.msra.mxu0 %v672
        %918 = vmatpush.msra.mxu0 %v670
        %919 = vmatpush.msra.mxu0 %v668
        %920 = vmatpush.msra.mxu0 %v666
        %921 = vmatmul.f32.gmra.mxu0 %v629
        %v922 = vpop.f32.mrf.mxu0
        %v923 = vadd.f32 %v903, %v922
        %924 = vdwg.mxu0
        %925 = vmatpush.msra.mxu0 %v728
        %926 = vmatpush.msra.mxu0 %v726
        %927 = vmatpush.msra.mxu0 %v724
        %928 = vmatpush.msra.mxu0 %v722
        %929 = vmatpush.msra.mxu0 %v720
        %930 = vmatpush.msra.mxu0 %v718
        %931 = vmatpush.msra.mxu0 %v716
        %932 = vmatpush.msra.mxu0 %v714
        %933 = vmatpush.msra.mxu0 %v712
        %934 = vmatpush.msra.mxu0 %v710
        %935 = vmatpush.msra.mxu0 %v708
        %936 = vmatpush.msra.mxu0 %v706
        %937 = vmatpush.msra.mxu0 %v704
        %938 = vmatpush.msra.mxu0 %v702
        %939 = vmatpush.msra.mxu0 %v700
        %940 = vmatpush.msra.mxu0 %v698
        %941 = vmatmul.f32.gmra.mxu0 %v630
        %v942 = vpop.f32.mrf.mxu0
        %v943 = vadd.f32 %v923, %v942
        %944 = vdwg.mxu0
        %945 = vmatpush.msra.mxu0 %v760
        %946 = vmatpush.msra.mxu0 %v758
        %947 = vmatpush.msra.mxu0 %v756
        %948 = vmatpush.msra.mxu0 %v754
        %949 = vmatpush.msra.mxu0 %v752
        %950 = vmatpush.msra.mxu0 %v750
        %951 = vmatpush.msra.mxu0 %v748
        %952 = vmatpush.msra.mxu0 %v746
        %953 = vmatpush.msra.mxu0 %v744
        %954 = vmatpush.msra.mxu0 %v742
        %955 = vmatpush.msra.mxu0 %v740
        %956 = vmatpush.msra.mxu0 %v738
        %957 = vmatpush.msra.mxu0 %v736
        %958 = vmatpush.msra.mxu0 %v734
        %959 = vmatpush.msra.mxu0 %v732
        %960 = vmatpush.msra.mxu0 %v730
        %961 = vmatmul.f32.gmra.mxu0 %v631
        %v962 = vpop.f32.mrf.mxu0
        %v963 = vadd.f32 %v943, %v962
        %964 = vdwg.mxu0
        %965 = vmatpush.msra.mxu0 0.0
        %966 = vmatpush.msra.mxu0 0.0
        %967 = vmatpush.msra.mxu0 0.0
        %968 = vmatpush.msra.mxu0 0.0
        %969 = vmatpush.msra.mxu0 0.0
        %970 = vmatpush.msra.mxu0 0.0
        %971 = vmatpush.msra.mxu0 %v780
        %972 = vmatpush.msra.mxu0 %v778
        %973 = vmatpush.msra.mxu0 %v776
        %974 = vmatpush.msra.mxu0 %v774
        %975 = vmatpush.msra.mxu0 %v772
        %976 = vmatpush.msra.mxu0 %v770
        %977 = vmatpush.msra.mxu0 %v768
        %978 = vmatpush.msra.mxu0 %v766
        %979 = vmatpush.msra.mxu0 %v764
        %980 = vmatpush.msra.mxu0 %v762
        %981 = vmatmul.f32.gmra.mxu0 %v783
        %v982 = vpop.f32.mrf.mxu0
        %v983 = vadd.f32 %v963, %v982
        %984 = vdwg.mxu0
        %v985 = vld [vmem:[%s4] sm:$0xff]
        %v986 = vld [vmem:[%s4 + $0x8] sm:$0xff]
        %v987 = vmul.f32 %v883, %v985
        %v988 = vmul.f32 %v983, %v986
        %v989 = vrot.slane %v987, 4
        %v990 = vadd.f32 %v987, %v989
        %v991 = vrot.slane %v990, 2
        %v992 = vadd.f32 %v990, %v991
        %v993 = vrot.slane %v992, 1
        %v994 = vadd.f32 %v992, %v993
        %v995 = vrot.slane %v988, 4
        %v996 = vadd.f32 %v988, %v995
        %v997 = vrot.slane %v996, 2
        %v998 = vadd.f32 %v996, %v997
        %v999 = vrot.slane %v998, 1
        %v1000 = vadd.f32 %v998, %v999
        %v1001 = vld [vmem:[%s5] sm:$0xff]
        %v1002 = vld [vmem:[%s5 + $0x8] sm:$0xff]
        %v1003 = vld [vmem:[%s5 + $0x10] sm:$0xff]
        %v1004 = vld [vmem:[%s5 + $0x18] sm:$0xff]
        %v1005 = vld [vmem:[%s5 + $0x20] sm:$0xff]
        %v1006 = vld [vmem:[%s5 + $0x28] sm:$0xff]
        %v1007 = vld [vmem:[%s5 + $0x30] sm:$0xff]
        %v1008 = vld [vmem:[%s5 + $0x38] sm:$0xff]
        %v1009 = vld [vmem:[%s5 + $0x40] sm:$0xff]
        %v1010 = vld [vmem:[%s5 + $0x48] sm:$0xff]
        %v1011 = vld [vmem:[%s5 + $0x50] sm:$0xff]
        %v1012 = vld [vmem:[%s5 + $0x58] sm:$0xff]
        %v1013 = vld [vmem:[%s5 + $0x60] sm:$0xff]
        %v1014 = vld [vmem:[%s5 + $0x68] sm:$0xff]
        %v1015 = vld [vmem:[%s5 + $0x70] sm:$0xff]
        %v1016 = vld [vmem:[%s5 + $0x78] sm:$0xff]
        %v1017 = vld [vmem:[%s5 + $0x80] sm:$0xff]
        %v1018 = vld [vmem:[%s5 + $0x88] sm:$0xff]
        %v1019 = vld [vmem:[%s5 + $0x90] sm:$0xff]
        %v1020 = vld [vmem:[%s5 + $0x98] sm:$0xff]
        %v1021 = vld [vmem:[%s5 + $0xa0] sm:$0xff]
        %v1022 = vld [vmem:[%s5 + $0xa8] sm:$0xff]
        %v1023 = vld [vmem:[%s5 + $0xb0] sm:$0xff]
        %v1024 = vld [vmem:[%s5 + $0xb8] sm:$0xff]
        %v1025 = vld [vmem:[%s5 + $0xc0] sm:$0xff]
        %v1026 = vld [vmem:[%s5 + $0xc8] sm:$0xff]
        %v1027 = vld [vmem:[%s5 + $0xd0] sm:$0xff]
        %v1028 = vld [vmem:[%s5 + $0xd8] sm:$0xff]
        %v1029 = vld [vmem:[%s5 + $0xe0] sm:$0xff]
        %v1030 = vld [vmem:[%s5 + $0xe8] sm:$0xff]
        %v1031 = vld [vmem:[%s5 + $0xf0] sm:$0xff]
        %v1032 = vld [vmem:[%s5 + $0xf8] sm:$0xff]
        %v1033 = vld [vmem:[%s6] sm:$0x1]
        %1034 = vmatpush.msra.mxu0 %v1016
        %1035 = vmatpush.msra.mxu0 %v1015
        %1036 = vmatpush.msra.mxu0 %v1014
        %1037 = vmatpush.msra.mxu0 %v1013
        %1038 = vmatpush.msra.mxu0 %v1012
        %1039 = vmatpush.msra.mxu0 %v1011
        %1040 = vmatpush.msra.mxu0 %v1010
        %1041 = vmatpush.msra.mxu0 %v1009
        %1042 = vmatpush.msra.mxu0 %v1008
        %1043 = vmatpush.msra.mxu0 %v1007
        %1044 = vmatpush.msra.mxu0 %v1006
        %1045 = vmatpush.msra.mxu0 %v1005
        %1046 = vmatpush.msra.mxu0 %v1004
        %1047 = vmatpush.msra.mxu0 %v1003
        %1048 = vmatpush.msra.mxu0 %v1002
        %1049 = vmatpush.msra.mxu0 %v1001
        %1050 = vmatmul.f32.gmra.mxu0 %v994
        %v1051 = vpop.f32.mrf.mxu0
        %v1052 = vadd.f32 %v1033, %v1051
        %1053 = vdwg.mxu0
        %1054 = vmatpush.msra.mxu0 %v1032
        %1055 = vmatpush.msra.mxu0 %v1031
        %1056 = vmatpush.msra.mxu0 %v1030
        %1057 = vmatpush.msra.mxu0 %v1029
        %1058 = vmatpush.msra.mxu0 %v1028
        %1059 = vmatpush.msra.mxu0 %v1027
        %1060 = vmatpush.msra.mxu0 %v1026
        %1061 = vmatpush.msra.mxu0 %v1025
        %1062 = vmatpush.msra.mxu0 %v1024
        %1063 = vmatpush.msra.mxu0 %v1023
        %1064 = vmatpush.msra.mxu0 %v1022
        %1065 = vmatpush.msra.mxu0 %v1021
        %1066 = vmatpush.msra.mxu0 %v1020
        %1067 = vmatpush.msra.mxu0 %v1019
        %1068 = vmatpush.msra.mxu0 %v1018
        %1069 = vmatpush.msra.mxu0 %v1017
        %1070 = vmatmul.f32.gmra.mxu0 %v1000
        %v1071 = vpop.f32.mrf.mxu0
        %v1072 = vadd.f32 %v1052, %v1071
        %1073 = vdwg.mxu0
        %v1074 = vmax.f32 %v1072, 0.0
        %v1075 = vld [vmem:[%s7] sm:$0xff]
        %v1076 = vld [vmem:[%s7 + $0x8] sm:$0xff]
        %v1077 = vld [vmem:[%s7 + $0x10] sm:$0xff]
        %v1078 = vld [vmem:[%s7 + $0x18] sm:$0xff]
        %v1079 = vld [vmem:[%s8] sm:$0x1]
        %vm1080 = vcmask 261120
        %v1082 = vsel %vm1080, %v1074, 0
        %1084 = vmatpush.msra.mxu0 0.0
        %1085 = vmatpush.msra.mxu0 0.0
        %1086 = vmatpush.msra.mxu0 0.0
        %1087 = vmatpush.msra.mxu0 0.0
        %1088 = vmatpush.msra.mxu0 0.0
        %1089 = vmatpush.msra.mxu0 0.0
        %1090 = vmatpush.msra.mxu0 0.0
        %1091 = vmatpush.msra.mxu0 0.0
        %1092 = vmatpush.msra.mxu0 0.0
        %1093 = vmatpush.msra.mxu0 0.0
        %1094 = vmatpush.msra.mxu0 0.0
        %1095 = vmatpush.msra.mxu0 0.0
        %1096 = vmatpush.msra.mxu0 %v1078
        %1097 = vmatpush.msra.mxu0 %v1077
        %1098 = vmatpush.msra.mxu0 %v1076
        %1099 = vmatpush.msra.mxu0 %v1075
        %1100 = vmatmul.f32.gmra.mxu0 %v1082
        %v1101 = vpop.f32.mrf.mxu0
        %v1102 = vadd.f32 %v1079, %v1101
        %1103 = vdwg.mxu0
        %vm1104 = vcmask 8192
        %v1105 = vsel %vm1104, %v1102, -inf
        %1106 = vmax.xlane.f32.xlu0 %v1105
        %v1107 = vpop.xlane.xlu0 %1106
        %v1108 = vsub.f32 %v1102, %v1107
        %v1109 = vmul.f32 %v1108, 1.442695
        %v1110 = vpow.pop %v1109
        %v1111 = vsel %vm1104, %v1110, 0.0
        %1112 = vadd.xlane.f32.xlu0 %v1111
        %v1113 = vpop.xlane.xlu0 %1112
        %v1114 = vlog2.pop %v1113
        %v1115 = vmul.f32 %v1114, 0.6931472
        %v1116 = vsub.f32 %v1108, %v1115
        %1117 = vst.msk [vmem:[%s341] sm:$0x1] %vm1104, %v1116
        %s1118 = sand.u32 %s226, 1
        %s1119 = scalar_lea.sflag [#allocation4], %s1118
        %s1120 = sand.u32 %s226, 1
        %s1121 = scalar_lea.vmem [#allocation5], %s1120
        // Predicated region
        $region61: #{tpu_custom_call.1} parent=55 // pred_check
          %p1122 = pneg %p236
        $region62: #{tpu_custom_call.1} parent=55 // pred_check_branch
          %1124 = sbr.rel (%p1122) target = $region64
        $region63: #{tpu_custom_call.1} parent=55 // pred_region
          %1126 = vsyncadd %s1119, 0
          %s1127 = scalar_lea.hbm %s9, %s24
          %s1129 = sshll.u32 %s1121, 4
          %s1130 = int_to_ptr.vmem [resolvable:$true] %s1129
          %s1131 = sshll.u32 %s1127, 4
          %s1132 = int_to_ptr.hbm [resolvable:$true] %s1131
          %1134 = dma.vmem_to_hbm [thread:$0]  %s1130, 16, %s1132, %s1119
        $region64: #{tpu_custom_call.1} parent=55 // pred_fallthru
          _
      $region56: #{tpu_custom_call.1} parent=5 // pred_fallthru
        _
      %p1135 = scmp.le.s32.totalorder 2, %s19
      // Predicated region
      $region65: #{tpu_custom_call.1} parent=5 // pred_check
        %p1136 = pneg %p1135
      $region66: #{tpu_custom_call.1} parent=5 // pred_check_branch
        %1138 = sbr.rel (%p1136) target = $region68
      $region67: #{tpu_custom_call.1} parent=5 // pred_region
        %s1139 = ssub.s32 %s19, 2
        // Predicated region
        $region69: #{tpu_custom_call.1} parent=67 // pred_check
          %p1140 = pneg %p242
        $region70: #{tpu_custom_call.1} parent=67 // pred_check_branch
          %1142 = sbr.rel (%p1140) target = $region72
        $region71: #{tpu_custom_call.1} parent=67 // pred_region
          %s1143 = sand.u32 %s227, 1
          %s1144 = scalar_lea.sflag [#allocation4], %s1143
          %s1145 = sand.u32 %s227, 1
          %s1146 = scalar_lea.vmem [#allocation5], %s1145
          %1148 = dma.done %s1144, 16
        $region72: #{tpu_custom_call.1} parent=67 // pred_fallthru
          _
      $region68: #{tpu_custom_call.1} parent=5 // pred_fallthru
        _
    $region6: #{tpu_custom_call.1} parent=1 // loop_footer
      %s23 = sadd.s32 1, %s19
    $region7: #{tpu_custom_call.1} parent=1 // loop_footer_branch
      %18 = sbr.rel target = $region3
    $region8: #{tpu_custom_call.1} parent=1 // loop_exit
      _
    %1149 = vsyncpa [#allocation3], 1
    %s1150 = scalar_lea.sflag [#allocation3], 1
    %1151 = vsyncpa %s1150, 1
    %1152 = vsyncpa [#allocation4], 1
    %s1153 = scalar_lea.sflag [#allocation4], 1
    %1154 = vsyncpa %s1153, 1

</llo_original>
